<compile_context>
chip_gen: v6e
topology: v6e:2x2x1
jax: 0.10.0
libtpu: 0.0.40
codegen_flags: <defaults>
</compile_context>

<pallas_src>
import functools
import math

import jax
import jax.numpy as jnp
from jax.experimental import pallas as pl
from jax.experimental.pallas import tpu as pltpu


def _corr_kernel(xp_ref, wmean_ref, wdot_ref, wsq_ref, pnorm_ref, o_ref, *, eps: float):
    # xp_ref:    (tm, G*width)  -- tile of packed input rows (G originals per row)
    # wmean_ref: (G*width, G*width) -- block-diag of full((width,width), 1/width)
    # wdot_ref:  (G*width, G*n) -- block-diag of p_centered^T
    # wsq_ref:   (G*width, G*n) -- block-diag of ones((width, n))
    # pnorm_ref: (1, G*n)       -- pattern norms tiled G times
    # o_ref:     (tm, G*n)
    xp = xp_ref[...].astype(jnp.float32)

    # Per-original-row mean, spread back across that row's width lanes (MXU).
    mean_spread = jnp.dot(xp, wmean_ref[...], preferred_element_type=jnp.float32)
    x_c = xp - mean_spread                                            # centered rows

    # Centered-correlation numerator via block-diagonal pattern matmul (MXU).
    dot = jnp.dot(x_c, wdot_ref[...], preferred_element_type=jnp.float32)   # (tm, G*n)

    # ||x_c||^2 per original row, replicated over its n output columns (MXU).
    sq = jnp.dot(x_c * x_c, wsq_ref[...], preferred_element_type=jnp.float32)

    denom = jnp.sqrt(sq) * pnorm_ref[...] + eps
    # Exact reciprocal (approx=True could exceed the 1e-5 tolerance).
    o_ref[...] = (dot * pl.reciprocal(denom)).astype(o_ref.dtype)


def learnable_pattern_similarity(x, k, l, *, eps: float = 1e-8, tile_packed_rows: int = 4096):
    """x: (B, *A, width) float32; k: (n, width-1); l: (n, 1). Returns (B, *A, n)."""
    patterns = jnp.concatenate([k, l], axis=1).astype(jnp.float32)    # (n, width)
    n, width = patterns.shape
    orig_shape = x.shape[:-1]
    assert x.shape[-1] == width
    M = math.prod(orig_shape)

    # --- lane-dense packing factor -------------------------------------------------
    if 256 % width == 0:
        G = 256 // width          # width=16 -> G=16: packed width 256, out width 16*n
    elif 128 % width == 0:
        G = 128 // width
    else:
        G = 1                     # fallback: unpacked layout (still correct)
    gw, gn = G * width, G * n

    x_flat = x.reshape(M, width).astype(jnp.float32)
    Mp = -(-M // G)
    M_pad = Mp * G
    if M_pad != M:
        # Zero rows give dot=0, ||x_c||=0, denom=eps -> finite output; sliced off below.
        x_flat = jnp.pad(x_flat, ((0, M_pad - M), (0, 0)))
    xp = x_flat.reshape(Mp, gw)

    # --- hoisted pattern preprocessing (plain JAX, tiny) ---------------------------
    p_c = patterns - jnp.mean(patterns, axis=-1, keepdims=True)       # (n, width)
    p_norm = jnp.sqrt(jnp.sum(p_c * p_c, axis=-1))                    # (n,)

    eye_g = jnp.eye(G, dtype=jnp.float32)
    w_dot = jnp.kron(eye_g, p_c.T)                                            # (gw, gn)
    w_sq = jnp.kron(eye_g, jnp.ones((width, n), jnp.float32))                 # (gw, gn)
    w_mean = jnp.kron(eye_g, jnp.full((width, width), 1.0 / width, jnp.float32))  # (gw, gw)
    p_norm_t = jnp.tile(p_norm, (G,)).reshape(1, gn)                          # (1, gn)

    # --- row tiling ----------------------------------------------------------------
    # Large tile (4096 packed rows = 6 MiB HBM/step) amortizes the ~0.35us step
    # overhead on all generations; cap at ~Mp/2 so the grid keeps >=2 steps and
    # megacore ("parallel") can use both v7x TensorCores for mid-size inputs.
    half = ((Mp + 1) // 2 + 7) // 8 * 8
    tm = max(8, min(tile_packed_rows, half))
    grid = (pl.cdiv(Mp, tm),)

    # Explicit VMEM budget: double-buffered x/out tiles + resident pattern matrices.
    tile_bytes = tm * (gw + gn) * 4
    resident_bytes = (gw * gw + 2 * gw * gn + gn) * 4
    vmem_limit = int(min(max(2 * tile_bytes + 2 * resident_bytes + (4 << 20), 16 << 20), 48 << 20))

    out = pl.pallas_call(
        functools.partial(_corr_kernel, eps=eps),
        out_shape=jax.ShapeDtypeStruct((Mp, gn), jnp.float32),
        grid=grid,
        in_specs=[
            pl.BlockSpec((tm, gw), lambda i: (i, 0)),
            pl.BlockSpec((gw, gw), lambda i: (0, 0)),   # resident in VMEM
            pl.BlockSpec((gw, gn), lambda i: (0, 0)),   # resident in VMEM
            pl.BlockSpec((gw, gn), lambda i: (0, 0)),   # resident in VMEM
            pl.BlockSpec((1, gn), lambda i: (0, 0)),    # resident in VMEM
        ],
        out_specs=pl.BlockSpec((tm, gn), lambda i: (i, 0)),
        compiler_params=pltpu.CompilerParams(
            dimension_semantics=("parallel",),
            vmem_limit_bytes=vmem_limit,
        ),
    )(xp, w_mean, w_dot, w_sq, p_norm_t)

    out = out.reshape(M_pad, n)[:M]
    return out.reshape(orig_shape + (n,)).astype(x.dtype)


def _reference(x, k, l, eps=1e-8):
    # Pure-JAX reference mirroring the PyTorch forward, for validation.
    patterns = jnp.concatenate([k, l], axis=1)
    p_c = patterns - patterns.mean(axis=-1, keepdims=True)
    p_norm = jnp.linalg.norm(p_c, axis=-1, keepdims=True)
    x_c = x - x.mean(axis=-1, keepdims=True)
    orig_shape = x.shape[:-1]
    x_flat = x_c.reshape(-1, x.shape[-1])
    x_norm = jnp.linalg.norm(x_flat, axis=-1, keepdims=True)
    dot = x_flat @ p_c.T
    corr = dot / (x_norm * p_norm.T + eps)
    return corr.reshape(orig_shape + (patterns.shape[0],))


if __name__ == "__main__":
    key = jax.random.PRNGKey(0)
    kx, kk, kx2 = jax.random.split(key, 3)

    # Shapes consistent with the module: B=2, A=(16,), width=16, n=8 patterns.
    B, A, width, n = 2, 16, 16, 8
    x = jax.random.normal(kx, (B, A, width), dtype=jnp.float32)
    # Parameter init matching __init__ shapes:
    #   k ~ U[0,1) of shape (n, width-1); l = ones of shape (n, 1) (non-trainable).
    k_param = jax.random.uniform(kk, (n, width - 1), dtype=jnp.float32)
    l_param = jnp.ones((n, 1), dtype=jnp.float32)

    out = jax.block_until_ready(learnable_pattern_similarity(x, k_param, l_param))
    ref = _reference(x, k_param, l_param)
    assert out.shape == (B, A, n)
    assert jnp.allclose(out, ref, atol=1e-5, rtol=1e-5), "mismatch vs reference"

    # Ragged test: flattened row count (105) not a multiple of the packing factor
    # or the tile, exercising the zero-pad + masked partial-block path.  Also add
    # a large DC offset to exercise the explicit-centering numerics.
    x2 = jax.random.normal(kx2, (3, 5, 7, width), dtype=jnp.float32) + 100.0
    out2 = jax.block_until_ready(learnable_pattern_similarity(x2, k_param, l_param))
    ref2 = _reference(x2, k_param, l_param)
    assert out2.shape == (3, 5, 7, n)
    assert jnp.allclose(out2, ref2, atol=1e-5, rtol=1e-5), "mismatch (ragged / offset)"

    print("KERNEL_OK")
</pallas_src>

<mosaic_0001>
module attributes {stable_mosaic.version = 11 : i64} {
  func.func @_corr_kernel(%arg0: i32, %arg1: memref<8x256xf32, #tpu.memory_space<vmem>>, %arg2: memref<256x256xf32, #tpu.memory_space<vmem>>, %arg3: memref<256x128xf32, #tpu.memory_space<vmem>>, %arg4: memref<256x128xf32, #tpu.memory_space<vmem>>, %arg5: memref<1x128xf32, #tpu.memory_space<vmem>>, %arg6: memref<8x128xf32, #tpu.memory_space<vmem>>) attributes {dimension_semantics = [#tpu.dimension_semantics<parallel>], iteration_bounds = array<i64: 1>, scalar_prefetch = 0 : i64, scratch_operands = 0 : i64, tpu.core_type = #tpu.core_type<tc>, window_params = [{transform_indices = @transform_0, window_bounds = array<i64: 8, 256>}, {pipeline_mode = #tpu.pipeline_mode<synchronous>, transform_indices = @transform_1, window_bounds = array<i64: 256, 256>}, {pipeline_mode = #tpu.pipeline_mode<synchronous>, transform_indices = @transform_2, window_bounds = array<i64: 256, 128>}, {pipeline_mode = #tpu.pipeline_mode<synchronous>, transform_indices = @transform_3, window_bounds = array<i64: 256, 128>}, {pipeline_mode = #tpu.pipeline_mode<synchronous>, transform_indices = @transform_4, window_bounds = array<i64: 1, 128>}, {transform_indices = @transform_5, window_bounds = array<i64: 8, 128>}]} {
    %c0 = arith.constant 0 : index
    %c0_0 = arith.constant 0 : index
    %0 = vector.load %arg1[%c0, %c0_0] : memref<8x256xf32, #tpu.memory_space<vmem>>, vector<8x256xf32>
    %c0_1 = arith.constant 0 : index
    %c0_2 = arith.constant 0 : index
    %1 = vector.load %arg2[%c0_1, %c0_2] : memref<256x256xf32, #tpu.memory_space<vmem>>, vector<256x256xf32>
    %cst = arith.constant dense<0.000000e+00> : vector<8x256xf32>
    %2 = tpu.matmul %0, %1, %cst {dimension_numbers = #tpu.dot_dimension_numbers<[1], [0], [0], [1], [0, 0, 1, 1], [], []>} : vector<8x256xf32>, vector<256x256xf32>, vector<8x256xf32> -> vector<8x256xf32>
    %3 = arith.subf %0, %2 : vector<8x256xf32>
    %c0_3 = arith.constant 0 : index
    %c0_4 = arith.constant 0 : index
    %4 = vector.load %arg3[%c0_3, %c0_4] : memref<256x128xf32, #tpu.memory_space<vmem>>, vector<256x128xf32>
    %cst_5 = arith.constant dense<0.000000e+00> : vector<8x128xf32>
    %5 = tpu.matmul %3, %4, %cst_5 {dimension_numbers = #tpu.dot_dimension_numbers<[1], [0], [0], [1], [0, 0, 1, 1], [], []>} : vector<8x256xf32>, vector<256x128xf32>, vector<8x128xf32> -> vector<8x128xf32>
    %6 = arith.mulf %3, %3 : vector<8x256xf32>
    %c0_6 = arith.constant 0 : index
    %c0_7 = arith.constant 0 : index
    %7 = vector.load %arg4[%c0_6, %c0_7] : memref<256x128xf32, #tpu.memory_space<vmem>>, vector<256x128xf32>
    %cst_8 = arith.constant dense<0.000000e+00> : vector<8x128xf32>
    %8 = tpu.matmul %6, %7, %cst_8 {dimension_numbers = #tpu.dot_dimension_numbers<[1], [0], [0], [1], [0, 0, 1, 1], [], []>} : vector<8x256xf32>, vector<256x128xf32>, vector<8x128xf32> -> vector<8x128xf32>
    %9 = math.sqrt %8 : vector<8x128xf32>
    %c0_9 = arith.constant 0 : index
    %c0_10 = arith.constant 0 : index
    %10 = vector.load %arg5[%c0_9, %c0_10] : memref<1x128xf32, #tpu.memory_space<vmem>>, vector<1x128xf32>
    %11 = vector.broadcast %10 : vector<1x128xf32> to vector<8x128xf32>
    %12 = arith.mulf %9, %11 : vector<8x128xf32>
    %cst_11 = arith.constant 9.99999993E-9 : f32
    %13 = vector.broadcast %cst_11 : f32 to vector<8x128xf32>
    %14 = arith.addf %12, %13 : vector<8x128xf32>
    %15 = tpu.reciprocal %14 : vector<8x128xf32> -> vector<8x128xf32>
    %16 = arith.mulf %5, %15 : vector<8x128xf32>
    %c0_12 = arith.constant 0 : index
    %c0_13 = arith.constant 0 : index
    %17 = vector.load %arg6[%c0_12, %c0_13] : memref<8x128xf32, #tpu.memory_space<vmem>>, vector<8x128xf32>
    tpu.vector_store %arg6[%c0_12, %c0_13], %16 {strides = array<i32>} : memref<8x128xf32, #tpu.memory_space<vmem>>, vector<8x128xf32>,
    return
  }
  func.func @transform_0(%arg0: i32) -> (i32, i32) {
    %c0_i32 = arith.constant 0 : i32
    %c0_i32_0 = arith.constant 0 : i32
    return %arg0, %c0_i32 : i32, i32
  }
  func.func @transform_1(%arg0: i32) -> (i32, i32) {
    %c0_i32 = arith.constant 0 : i32
    %c0_i32_0 = arith.constant 0 : i32
    %c0_i32_1 = arith.constant 0 : i32
    return %c0_i32, %c0_i32_0 : i32, i32
  }
  func.func @transform_2(%arg0: i32) -> (i32, i32) {
    %c0_i32 = arith.constant 0 : i32
    %c0_i32_0 = arith.constant 0 : i32
    %c0_i32_1 = arith.constant 0 : i32
    return %c0_i32, %c0_i32_0 : i32, i32
  }
  func.func @transform_3(%arg0: i32) -> (i32, i32) {
    %c0_i32 = arith.constant 0 : i32
    %c0_i32_0 = arith.constant 0 : i32
    %c0_i32_1 = arith.constant 0 : i32
    return %c0_i32, %c0_i32_0 : i32, i32
  }
  func.func @transform_4(%arg0: i32) -> (i32, i32) {
    %c0_i32 = arith.constant 0 : i32
    %c0_i32_0 = arith.constant 0 : i32
    %c0_i32_1 = arith.constant 0 : i32
    return %c0_i32, %c0_i32_0 : i32, i32
  }
  func.func @transform_5(%arg0: i32) -> (i32, i32) {
    %c0_i32 = arith.constant 0 : i32
    %c0_i32_0 = arith.constant 0 : i32
    return %arg0, %c0_i32 : i32, i32
  }
}

</mosaic_0001>

<llo_original>
// kernel: tpu_custom_call.1
$region0: #{tpu_custom_call.1}
  #allocation0 [shape = 'u32[]', space=smem, size = 0x4, offset = 0x4, fixed_abs, tag = 'smem constant byte address 0x4 - core index']
  #allocation1 [shape = 'u32[144,128]{1,0:T(1,128)}', space=vmem, size = 0x12000, scoped, tag = 'internal scratch']
  %s0 = inlined_call_operand.hbm [shape: f32[2,256], index: 0, kind: input, shape index: {}]
  %s1 = inlined_call_operand.hbm [shape: f32[256,256], index: 1, kind: input, shape index: {}]
  %s2 = inlined_call_operand.hbm [shape: f32[256,128], index: 2, kind: input, shape index: {}]
  %s3 = inlined_call_operand.hbm [shape: f32[256,128], index: 3, kind: input, shape index: {}]
  %s4 = inlined_call_operand.vmem [shape: f32[1,128], index: 4, kind: input, shape index: {}]
  %s5 = inlined_call_operand.hbm [shape: f32[2,128], index: 5, kind: output, shape index: {}]
  %s6 = sld [smem:[#allocation0]]
  $region46: #{tpu_custom_call.1} parent=0
    _
  %s8 = ssub.s32 1, %s6
  %s9 = scalar_select 0, %s8, %s6
  $region1: #{tpu_custom_call.1} parent=0
    #allocation2 [shape = 'u8[8192]{0}', space=vmem, size = 0x2000, scoped, tag = 'input window, operand 0, single buffered']
    #allocation3 [shape = 's32[1]{0}', space=sflag, size = 0x4, scoped, tag = 'scoped memory for tpu_custom_call.1']
    #allocation4 [shape = 's32[1]{0}', space=sflag, size = 0x4, scoped, tag = 'scoped memory for tpu_custom_call.1']
    #allocation5 [shape = 'u8[262144]{0}', space=vmem, size = 0x40000, scoped, tag = 'input window, operand 1, single buffered']
    #allocation6 [shape = 's32[1]{0}', space=sflag, size = 0x4, scoped, tag = 'scoped memory for tpu_custom_call.1']
    #allocation7 [shape = 'u8[131072]{0}', space=vmem, size = 0x20000, scoped, tag = 'input window, operand 2, single buffered']
    #allocation8 [shape = 'u8[131072]{0}', space=vmem, size = 0x20000, scoped, tag = 'input window, operand 3, single buffered']
    #allocation9 [shape = 's32[1]{0}', space=sflag, size = 0x4, scoped, tag = 'scoped memory for tpu_custom_call.1']
    #allocation10 [shape = 'u8[4096]{0}', space=vmem, size = 0x1000, scoped, tag = 'output window, operand 0, single buffered']
    %10 = vsyncpa [#allocation3], 0
    %11 = vsyncpa [#allocation6], 0
    %12 = vsyncpa [#allocation9], 0
    %13 = vsyncpa [#allocation4], 0
    // Predicated region
    $region2: #{tpu_custom_call.1} parent=1 // pred_check
      _
    $region3: #{tpu_custom_call.1} parent=1 // pred_check_branch
      %15 = sbr.rel (0) target = $region5
    $region4: #{tpu_custom_call.1} parent=1 // pred_region
      %s17 = ssub.s32 256, 64
      %18 = vsyncadd [#allocation3], %s17
      %s19 = sshll.u32 [#allocation2], 4
      %s20 = int_to_ptr.vmem [resolvable:$true] %s19
      %25 = dma.hbm_to_vmem [thread:$0]  %s0, 64, %s20, [#allocation3], 64, 64, 4
    $region5: #{tpu_custom_call.1} parent=1 // pred_fallthru
      _
    // Predicated region
    $region6: #{tpu_custom_call.1} parent=1 // pred_check
      _
    $region7: #{tpu_custom_call.1} parent=1 // pred_check_branch
      %27 = sbr.rel (0) target = $region9
    $region8: #{tpu_custom_call.1} parent=1 // pred_region
      %s29 = ssub.s32 8192, 8192
      %30 = vsyncadd [#allocation6], %s29
      %s31 = sshll.u32 [#allocation5], 4
      %s32 = int_to_ptr.vmem [resolvable:$true] %s31
      %37 = dma.hbm_to_vmem [thread:$0]  %s1, 8192, %s32, [#allocation6], 256, 256, 16
    $region9: #{tpu_custom_call.1} parent=1 // pred_fallthru
      _
    // Predicated region
    $region10: #{tpu_custom_call.1} parent=1 // pred_check
      _
    $region11: #{tpu_custom_call.1} parent=1 // pred_check_branch
      %39 = sbr.rel (0) target = $region13
    $region12: #{tpu_custom_call.1} parent=1 // pred_region
      %s41 = ssub.s32 4096, 4096
      %42 = vsyncadd [#allocation6], %s41
      %s43 = sshll.u32 [#allocation7], 4
      %s44 = int_to_ptr.vmem [resolvable:$true] %s43
      %49 = dma.hbm_to_vmem [thread:$0]  %s2, 4096, %s44, [#allocation6], 128, 128, 8
    $region13: #{tpu_custom_call.1} parent=1 // pred_fallthru
      _
    // Predicated region
    $region14: #{tpu_custom_call.1} parent=1 // pred_check
      _
    $region15: #{tpu_custom_call.1} parent=1 // pred_check_branch
      %51 = sbr.rel (0) target = $region17
    $region16: #{tpu_custom_call.1} parent=1 // pred_region
      %s53 = ssub.s32 4096, 4096
      %54 = vsyncadd [#allocation9], %s53
      %s55 = sshll.u32 [#allocation8], 4
      %s56 = int_to_ptr.vmem [resolvable:$true] %s55
      %61 = dma.hbm_to_vmem [thread:$0]  %s3, 4096, %s56, [#allocation9], 128, 128, 8
    $region17: #{tpu_custom_call.1} parent=1 // pred_fallthru
      _
    // Predicated region
    $region18: #{tpu_custom_call.1} parent=1 // pred_check
      _
    $region19: #{tpu_custom_call.1} parent=1 // pred_check_branch
      %63 = sbr.rel (0) target = $region21
    $region20: #{tpu_custom_call.1} parent=1 // pred_region
      _
    $region21: #{tpu_custom_call.1} parent=1 // pred_fallthru
      _
    // Predicated region
    $region22: #{tpu_custom_call.1} parent=1 // pred_check
      _
    $region23: #{tpu_custom_call.1} parent=1 // pred_check_branch
      %65 = sbr.rel (0) target = $region25
    $region24: #{tpu_custom_call.1} parent=1 // pred_region
      %66 = dma.done [#allocation3], 256
    $region25: #{tpu_custom_call.1} parent=1 // pred_fallthru
      _
    // Predicated region
    $region26: #{tpu_custom_call.1} parent=1 // pred_check
      _
    $region27: #{tpu_custom_call.1} parent=1 // pred_check_branch
      %68 = sbr.rel (0) target = $region29
    $region28: #{tpu_custom_call.1} parent=1 // pred_region
      %69 = dma.done [#allocation6], 8192
    $region29: #{tpu_custom_call.1} parent=1 // pred_fallthru
      _
    // Predicated region
    $region30: #{tpu_custom_call.1} parent=1 // pred_check
      _
    $region31: #{tpu_custom_call.1} parent=1 // pred_check_branch
      %71 = sbr.rel (0) target = $region33
    $region32: #{tpu_custom_call.1} parent=1 // pred_region
      %72 = dma.done [#allocation6], 4096
    $region33: #{tpu_custom_call.1} parent=1 // pred_fallthru
      _
    // Predicated region
    $region34: #{tpu_custom_call.1} parent=1 // pred_check
      _
    $region35: #{tpu_custom_call.1} parent=1 // pred_check_branch
      %74 = sbr.rel (0) target = $region37
    $region36: #{tpu_custom_call.1} parent=1 // pred_region
      %75 = dma.done [#allocation9], 4096
    $region37: #{tpu_custom_call.1} parent=1 // pred_fallthru
      _
    %v76 = vld [vmem:[#allocation2] sm:$0xf]
    %v77 = vld [vmem:[#allocation2 + $0x4] sm:$0xf]
    %v78 = vld [vmem:[#allocation2 + $0x8] sm:$0xf]
    %v79 = vld [vmem:[#allocation2 + $0xc] sm:$0xf]
    %v80 = vld [vmem:[#allocation5] sm:$0xff]
    %v81 = vld [vmem:[#allocation5 + $0x8] sm:$0xff]
    %v82 = vld [vmem:[#allocation5 + $0x10] sm:$0xff]
    %v83 = vld [vmem:[#allocation5 + $0x18] sm:$0xff]
    %v84 = vld [vmem:[#allocation5 + $0x20] sm:$0xff]
    %v85 = vld [vmem:[#allocation5 + $0x28] sm:$0xff]
    %v86 = vld [vmem:[#allocation5 + $0x30] sm:$0xff]
    %v87 = vld [vmem:[#allocation5 + $0x38] sm:$0xff]
    %v88 = vld [vmem:[#allocation5 + $0x40] sm:$0xff]
    %v89 = vld [vmem:[#allocation5 + $0x48] sm:$0xff]
    %v90 = vld [vmem:[#allocation5 + $0x50] sm:$0xff]
    %v91 = vld [vmem:[#allocation5 + $0x58] sm:$0xff]
    %v92 = vld [vmem:[#allocation5 + $0x60] sm:$0xff]
    %v93 = vld [vmem:[#allocation5 + $0x68] sm:$0xff]
    %v94 = vld [vmem:[#allocation5 + $0x70] sm:$0xff]
    %v95 = vld [vmem:[#allocation5 + $0x78] sm:$0xff]
    %v96 = vld [vmem:[#allocation5 + $0x80] sm:$0xff]
    %v97 = vld [vmem:[#allocation5 + $0x88] sm:$0xff]
    %v98 = vld [vmem:[#allocation5 + $0x90] sm:$0xff]
    %v99 = vld [vmem:[#allocation5 + $0x98] sm:$0xff]
    %v100 = vld [vmem:[#allocation5 + $0xa0] sm:$0xff]
    %v101 = vld [vmem:[#allocation5 + $0xa8] sm:$0xff]
    %v102 = vld [vmem:[#allocation5 + $0xb0] sm:$0xff]
    %v103 = vld [vmem:[#allocation5 + $0xb8] sm:$0xff]
    %v104 = vld [vmem:[#allocation5 + $0xc0] sm:$0xff]
    %v105 = vld [vmem:[#allocation5 + $0xc8] sm:$0xff]
    %v106 = vld [vmem:[#allocation5 + $0xd0] sm:$0xff]
    %v107 = vld [vmem:[#allocation5 + $0xd8] sm:$0xff]
    %v108 = vld [vmem:[#allocation5 + $0xe0] sm:$0xff]
    %v109 = vld [vmem:[#allocation5 + $0xe8] sm:$0xff]
    %v110 = vld [vmem:[#allocation5 + $0xf0] sm:$0xff]
    %v111 = vld [vmem:[#allocation5 + $0xf8] sm:$0xff]
    %v112 = vld [vmem:[#allocation5 + $0x100] sm:$0xff]
    %v113 = vld [vmem:[#allocation5 + $0x108] sm:$0xff]
    %v114 = vld [vmem:[#allocation5 + $0x110] sm:$0xff]
    %v115 = vld [vmem:[#allocation5 + $0x118] sm:$0xff]
    %v116 = vld [vmem:[#allocation5 + $0x120] sm:$0xff]
    %v117 = vld [vmem:[#allocation5 + $0x128] sm:$0xff]
    %v118 = vld [vmem:[#allocation5 + $0x130] sm:$0xff]
    %v119 = vld [vmem:[#allocation5 + $0x138] sm:$0xff]
    %v120 = vld [vmem:[#allocation5 + $0x140] sm:$0xff]
    %v121 = vld [vmem:[#allocation5 + $0x148] sm:$0xff]
    %v122 = vld [vmem:[#allocation5 + $0x150] sm:$0xff]
    %v123 = vld [vmem:[#allocation5 + $0x158] sm:$0xff]
    %v124 = vld [vmem:[#allocation5 + $0x160] sm:$0xff]
    %v125 = vld [vmem:[#allocation5 + $0x168] sm:$0xff]
    %v126 = vld [vmem:[#allocation5 + $0x170] sm:$0xff]
    %v127 = vld [vmem:[#allocation5 + $0x178] sm:$0xff]
    %v128 = vld [vmem:[#allocation5 + $0x180] sm:$0xff]
    %v129 = vld [vmem:[#allocation5 + $0x188] sm:$0xff]
    %v130 = vld [vmem:[#allocation5 + $0x190] sm:$0xff]
    %v131 = vld [vmem:[#allocation5 + $0x198] sm:$0xff]
    %v132 = vld [vmem:[#allocation5 + $0x1a0] sm:$0xff]
    %v133 = vld [vmem:[#allocation5 + $0x1a8] sm:$0xff]
    %v134 = vld [vmem:[#allocation5 + $0x1b0] sm:$0xff]
    %v135 = vld [vmem:[#allocation5 + $0x1b8] sm:$0xff]
    %v136 = vld [vmem:[#allocation5 + $0x1c0] sm:$0xff]
    %v137 = vld [vmem:[#allocation5 + $0x1c8] sm:$0xff]
    %v138 = vld [vmem:[#allocation5 + $0x1d0] sm:$0xff]
    %v139 = vld [vmem:[#allocation5 + $0x1d8] sm:$0xff]
    %v140 = vld [vmem:[#allocation5 + $0x1e0] sm:$0xff]
    %v141 = vld [vmem:[#allocation5 + $0x1e8] sm:$0xff]
    %v142 = vld [vmem:[#allocation5 + $0x1f0] sm:$0xff]
    %v143 = vld [vmem:[#allocation5 + $0x1f8] sm:$0xff]
    %v148 = vcombine.low %v76, %v77
    %v149 = vcombine.low %v78, %v79
    %v151 = vunpack.c.l.s4 1983009808
    %v152 = vunpack.c.0.s8 %v151
    %v153 = vlaneseq
    %v154 = vshrl.u32 %v153, 7
    %v155 = vsub.s32 %v152, %v154
    %v156 = vrot.slane %v148, %v155
    %v158 = vunpack.c.l.s4 1983009808
    %v159 = vunpack.c.0.s8 %v158
    %v160 = vlaneseq
    %v161 = vshrl.u32 %v160, 7
    %v162 = vsub.s32 %v159, %v161
    %v163 = vrot.slane %v149, %v162
    %v164 = vcombine.low %v156, %v163
    %v165 = vcombine.high %v156, %v163
    %168 = vmatprep.subr.mxu0 %v111
    %169 = vmatpush1.msra.mxu0 %v110
    %170 = vmatprep.subr.mxu0 %v109
    %171 = vmatpush1.msra.mxu0 %v108
    %172 = vmatprep.subr.mxu0 %v107
    %173 = vmatpush1.msra.mxu0 %v106
    %174 = vmatprep.subr.mxu0 %v105
    %175 = vmatpush1.msra.mxu0 %v104
    %176 = vmatprep.subr.mxu0 %v103
    %177 = vmatpush1.msra.mxu0 %v102
    %178 = vmatprep.subr.mxu0 %v101
    %179 = vmatpush1.msra.mxu0 %v100
    %180 = vmatprep.subr.mxu0 %v99
    %181 = vmatpush1.msra.mxu0 %v98
    %182 = vmatprep.subr.mxu0 %v97
    %183 = vmatpush1.msra.mxu0 %v96
    %184 = vmatprep.subr.mxu0 %v95
    %185 = vmatpush1.msra.mxu0 %v94
    %186 = vmatprep.subr.mxu0 %v93
    %187 = vmatpush1.msra.mxu0 %v92
    %188 = vmatprep.subr.mxu0 %v91
    %189 = vmatpush1.msra.mxu0 %v90
    %190 = vmatprep.subr.mxu0 %v89
    %191 = vmatpush1.msra.mxu0 %v88
    %192 = vmatprep.subr.mxu0 %v87
    %193 = vmatpush1.msra.mxu0 %v86
    %194 = vmatprep.subr.mxu0 %v85
    %195 = vmatpush1.msra.mxu0 %v84
    %196 = vmatprep.subr.mxu0 %v83
    %197 = vmatpush1.msra.mxu0 %v82
    %198 = vmatprep.subr.mxu0 %v81
    %199 = vmatpush1.msra.mxu0 %v80
    %200 = vmatprep.subr.mxu0 %v143
    %201 = vmatpush2.msra.mxu0 %v142
    %202 = vmatprep.subr.mxu0 %v141
    %203 = vmatpush2.msra.mxu0 %v140
    %204 = vmatprep.subr.mxu0 %v139
    %205 = vmatpush2.msra.mxu0 %v138
    %206 = vmatprep.subr.mxu0 %v137
    %207 = vmatpush2.msra.mxu0 %v136
    %208 = vmatprep.subr.mxu0 %v135
    %209 = vmatpush2.msra.mxu0 %v134
    %210 = vmatprep.subr.mxu0 %v133
    %211 = vmatpush2.msra.mxu0 %v132
    %212 = vmatprep.subr.mxu0 %v131
    %213 = vmatpush2.msra.mxu0 %v130
    %214 = vmatprep.subr.mxu0 %v129
    %215 = vmatpush2.msra.mxu0 %v128
    %216 = vmatprep.subr.mxu0 %v127
    %217 = vmatpush2.msra.mxu0 %v126
    %218 = vmatprep.subr.mxu0 %v125
    %219 = vmatpush2.msra.mxu0 %v124
    %220 = vmatprep.subr.mxu0 %v123
    %221 = vmatpush2.msra.mxu0 %v122
    %222 = vmatprep.subr.mxu0 %v121
    %223 = vmatpush2.msra.mxu0 %v120
    %224 = vmatprep.subr.mxu0 %v119
    %225 = vmatpush2.msra.mxu0 %v118
    %226 = vmatprep.subr.mxu0 %v117
    %227 = vmatpush2.msra.mxu0 %v116
    %228 = vmatprep.subr.mxu0 %v115
    %229 = vmatpush2.msra.mxu0 %v114
    %230 = vmatprep.subr.mxu0 %v113
    %231 = vmatpush2.msra.mxu0 %v112
    %232 = vmatprep.mubr.f32.mxu0 %v165
    %233 = vmatmul.mubr.f32.gmra.mxu0 %v164
    %v234 = vpop.f32.mrf.mxu0
    %v235 = vadd.f32 0.0, %v234
    %v236 = vpop.f32.mrf.mxu0
    %v237 = vadd.f32 0.0, %v236
    %238 = vdwg.mxu0
    %v241 = vcombine.low %v235, %v237
    %v242 = vcombine.high %v235, %v237
    %v244 = vunpack.c.l.s4 1983009808
    %v245 = vunpack.c.0.s8 %v244
    %v246 = vlaneseq
    %v247 = vshrl.u32 %v246, 7
    %v248 = vsub.s32 %v245, %v247
    %v249 = vrot.slane %v241, %v248
    %v251 = vunpack.c.l.s4 1983009808
    %v252 = vunpack.c.0.s8 %v251
    %v253 = vlaneseq
    %v254 = vshrl.u32 %v253, 7
    %v255 = vsub.s32 %v252, %v254
    %v256 = vrot.slane %v242, %v255
    %v257 = vcombine.high %v249, %v249
    %v258 = vcombine.high %v256, %v256
    %v263 = vsub.f32 %v76, %v249
    %v264 = vsub.f32 %v77, %v257
    %v265 = vsub.f32 %v78, %v256
    %v266 = vsub.f32 %v79, %v258
    %v267 = vld [vmem:[#allocation7] sm:$0xff]
    %v268 = vld [vmem:[#allocation7 + $0x8] sm:$0xff]
    %v269 = vld [vmem:[#allocation7 + $0x10] sm:$0xff]
    %v270 = vld [vmem:[#allocation7 + $0x18] sm:$0xff]
    %v271 = vld [vmem:[#allocation7 + $0x20] sm:$0xff]
    %v272 = vld [vmem:[#allocation7 + $0x28] sm:$0xff]
    %v273 = vld [vmem:[#allocation7 + $0x30] sm:$0xff]
    %v274 = vld [vmem:[#allocation7 + $0x38] sm:$0xff]
    %v275 = vld [vmem:[#allocation7 + $0x40] sm:$0xff]
    %v276 = vld [vmem:[#allocation7 + $0x48] sm:$0xff]
    %v277 = vld [vmem:[#allocation7 + $0x50] sm:$0xff]
    %v278 = vld [vmem:[#allocation7 + $0x58] sm:$0xff]
    %v279 = vld [vmem:[#allocation7 + $0x60] sm:$0xff]
    %v280 = vld [vmem:[#allocation7 + $0x68] sm:$0xff]
    %v281 = vld [vmem:[#allocation7 + $0x70] sm:$0xff]
    %v282 = vld [vmem:[#allocation7 + $0x78] sm:$0xff]
    %v283 = vld [vmem:[#allocation7 + $0x80] sm:$0xff]
    %v284 = vld [vmem:[#allocation7 + $0x88] sm:$0xff]
    %v285 = vld [vmem:[#allocation7 + $0x90] sm:$0xff]
    %v286 = vld [vmem:[#allocation7 + $0x98] sm:$0xff]
    %v287 = vld [vmem:[#allocation7 + $0xa0] sm:$0xff]
    %v288 = vld [vmem:[#allocation7 + $0xa8] sm:$0xff]
    %v289 = vld [vmem:[#allocation7 + $0xb0] sm:$0xff]
    %v290 = vld [vmem:[#allocation7 + $0xb8] sm:$0xff]
    %v291 = vld [vmem:[#allocation7 + $0xc0] sm:$0xff]
    %v292 = vld [vmem:[#allocation7 + $0xc8] sm:$0xff]
    %v293 = vld [vmem:[#allocation7 + $0xd0] sm:$0xff]
    %v294 = vld [vmem:[#allocation7 + $0xd8] sm:$0xff]
    %v295 = vld [vmem:[#allocation7 + $0xe0] sm:$0xff]
    %v296 = vld [vmem:[#allocation7 + $0xe8] sm:$0xff]
    %v297 = vld [vmem:[#allocation7 + $0xf0] sm:$0xff]
    %v298 = vld [vmem:[#allocation7 + $0xf8] sm:$0xff]
    %v303 = vcombine.low %v263, %v264
    %v304 = vcombine.low %v265, %v266
    %v306 = vunpack.c.l.s4 1983009808
    %v307 = vunpack.c.0.s8 %v306
    %v308 = vlaneseq
    %v309 = vshrl.u32 %v308, 7
    %v310 = vsub.s32 %v307, %v309
    %v311 = vrot.slane %v303, %v310
    %v313 = vunpack.c.l.s4 1983009808
    %v314 = vunpack.c.0.s8 %v313
    %v315 = vlaneseq
    %v316 = vshrl.u32 %v315, 7
    %v317 = vsub.s32 %v314, %v316
    %v318 = vrot.slane %v304, %v317
    %v319 = vcombine.low %v311, %v318
    %v320 = vcombine.high %v311, %v318
    %323 = vmatprep.subr.mxu0 0.0
    %324 = vmatpush1.msra.mxu0 %v282
    %325 = vmatprep.subr.mxu0 0.0
    %326 = vmatpush1.msra.mxu0 %v281
    %327 = vmatprep.subr.mxu0 0.0
    %328 = vmatpush1.msra.mxu0 %v280
    %329 = vmatprep.subr.mxu0 0.0
    %330 = vmatpush1.msra.mxu0 %v279
    %331 = vmatprep.subr.mxu0 0.0
    %332 = vmatpush1.msra.mxu0 %v278
    %333 = vmatprep.subr.mxu0 0.0
    %334 = vmatpush1.msra.mxu0 %v277
    %335 = vmatprep.subr.mxu0 0.0
    %336 = vmatpush1.msra.mxu0 %v276
    %337 = vmatprep.subr.mxu0 0.0
    %338 = vmatpush1.msra.mxu0 %v275
    %339 = vmatprep.subr.mxu0 0.0
    %340 = vmatpush1.msra.mxu0 %v274
    %341 = vmatprep.subr.mxu0 0.0
    %342 = vmatpush1.msra.mxu0 %v273
    %343 = vmatprep.subr.mxu0 0.0
    %344 = vmatpush1.msra.mxu0 %v272
    %345 = vmatprep.subr.mxu0 0.0
    %346 = vmatpush1.msra.mxu0 %v271
    %347 = vmatprep.subr.mxu0 0.0
    %348 = vmatpush1.msra.mxu0 %v270
    %349 = vmatprep.subr.mxu0 0.0
    %350 = vmatpush1.msra.mxu0 %v269
    %351 = vmatprep.subr.mxu0 0.0
    %352 = vmatpush1.msra.mxu0 %v268
    %353 = vmatprep.subr.mxu0 0.0
    %354 = vmatpush1.msra.mxu0 %v267
    %355 = vmatprep.subr.mxu0 0.0
    %356 = vmatpush2.msra.mxu0 %v298
    %357 = vmatprep.subr.mxu0 0.0
    %358 = vmatpush2.msra.mxu0 %v297
    %359 = vmatprep.subr.mxu0 0.0
    %360 = vmatpush2.msra.mxu0 %v296
    %361 = vmatprep.subr.mxu0 0.0
    %362 = vmatpush2.msra.mxu0 %v295
    %363 = vmatprep.subr.mxu0 0.0
    %364 = vmatpush2.msra.mxu0 %v294
    %365 = vmatprep.subr.mxu0 0.0
    %366 = vmatpush2.msra.mxu0 %v293
    %367 = vmatprep.subr.mxu0 0.0
    %368 = vmatpush2.msra.mxu0 %v292
    %369 = vmatprep.subr.mxu0 0.0
    %370 = vmatpush2.msra.mxu0 %v291
    %371 = vmatprep.subr.mxu0 0.0
    %372 = vmatpush2.msra.mxu0 %v290
    %373 = vmatprep.subr.mxu0 0.0
    %374 = vmatpush2.msra.mxu0 %v289
    %375 = vmatprep.subr.mxu0 0.0
    %376 = vmatpush2.msra.mxu0 %v288
    %377 = vmatprep.subr.mxu0 0.0
    %378 = vmatpush2.msra.mxu0 %v287
    %379 = vmatprep.subr.mxu0 0.0
    %380 = vmatpush2.msra.mxu0 %v286
    %381 = vmatprep.subr.mxu0 0.0
    %382 = vmatpush2.msra.mxu0 %v285
    %383 = vmatprep.subr.mxu0 0.0
    %384 = vmatpush2.msra.mxu0 %v284
    %385 = vmatprep.subr.mxu0 0.0
    %386 = vmatpush2.msra.mxu0 %v283
    %387 = vmatprep.mubr.f32.mxu0 %v320
    %388 = vmatmul.mubr.f32.gmra.mxu0 %v319
    %v389 = vpop.f32.mrf.mxu0
    %v390 = vadd.f32 0.0, %v389
    %v391 = vpop.f32.mrf.mxu0
    %392 = vdwg.mxu0
    %v393 = vmul.f32 %v263, %v263
    %v394 = vmul.f32 %v264, %v264
    %v395 = vmul.f32 %v265, %v265
    %v396 = vmul.f32 %v266, %v266
    %v397 = vld [vmem:[#allocation8] sm:$0xff]
    %v398 = vld [vmem:[#allocation8 + $0x8] sm:$0xff]
    %v399 = vld [vmem:[#allocation8 + $0x10] sm:$0xff]
    %v400 = vld [vmem:[#allocation8 + $0x18] sm:$0xff]
    %v401 = vld [vmem:[#allocation8 + $0x20] sm:$0xff]
    %v402 = vld [vmem:[#allocation8 + $0x28] sm:$0xff]
    %v403 = vld [vmem:[#allocation8 + $0x30] sm:$0xff]
    %v404 = vld [vmem:[#allocation8 + $0x38] sm:$0xff]
    %v405 = vld [vmem:[#allocation8 + $0x40] sm:$0xff]
    %v406 = vld [vmem:[#allocation8 + $0x48] sm:$0xff]
    %v407 = vld [vmem:[#allocation8 + $0x50] sm:$0xff]
    %v408 = vld [vmem:[#allocation8 + $0x58] sm:$0xff]
    %v409 = vld [vmem:[#allocation8 + $0x60] sm:$0xff]
    %v410 = vld [vmem:[#allocation8 + $0x68] sm:$0xff]
    %v411 = vld [vmem:[#allocation8 + $0x70] sm:$0xff]
    %v412 = vld [vmem:[#allocation8 + $0x78] sm:$0xff]
    %v413 = vld [vmem:[#allocation8 + $0x80] sm:$0xff]
    %v414 = vld [vmem:[#allocation8 + $0x88] sm:$0xff]
    %v415 = vld [vmem:[#allocation8 + $0x90] sm:$0xff]
    %v416 = vld [vmem:[#allocation8 + $0x98] sm:$0xff]
    %v417 = vld [vmem:[#allocation8 + $0xa0] sm:$0xff]
    %v418 = vld [vmem:[#allocation8 + $0xa8] sm:$0xff]
    %v419 = vld [vmem:[#allocation8 + $0xb0] sm:$0xff]
    %v420 = vld [vmem:[#allocation8 + $0xb8] sm:$0xff]
    %v421 = vld [vmem:[#allocation8 + $0xc0] sm:$0xff]
    %v422 = vld [vmem:[#allocation8 + $0xc8] sm:$0xff]
    %v423 = vld [vmem:[#allocation8 + $0xd0] sm:$0xff]
    %v424 = vld [vmem:[#allocation8 + $0xd8] sm:$0xff]
    %v425 = vld [vmem:[#allocation8 + $0xe0] sm:$0xff]
    %v426 = vld [vmem:[#allocation8 + $0xe8] sm:$0xff]
    %v427 = vld [vmem:[#allocation8 + $0xf0] sm:$0xff]
    %v428 = vld [vmem:[#allocation8 + $0xf8] sm:$0xff]
    %v433 = vcombine.low %v393, %v394
    %v434 = vcombine.low %v395, %v396
    %v436 = vunpack.c.l.s4 1983009808
    %v437 = vunpack.c.0.s8 %v436
    %v438 = vlaneseq
    %v439 = vshrl.u32 %v438, 7
    %v440 = vsub.s32 %v437, %v439
    %v441 = vrot.slane %v433, %v440
    %v443 = vunpack.c.l.s4 1983009808
    %v444 = vunpack.c.0.s8 %v443
    %v445 = vlaneseq
    %v446 = vshrl.u32 %v445, 7
    %v447 = vsub.s32 %v444, %v446
    %v448 = vrot.slane %v434, %v447
    %v449 = vcombine.low %v441, %v448
    %v450 = vcombine.high %v441, %v448
    %453 = vmatprep.subr.mxu0 0.0
    %454 = vmatpush1.msra.mxu0 %v412
    %455 = vmatprep.subr.mxu0 0.0
    %456 = vmatpush1.msra.mxu0 %v411
    %457 = vmatprep.subr.mxu0 0.0
    %458 = vmatpush1.msra.mxu0 %v410
    %459 = vmatprep.subr.mxu0 0.0
    %460 = vmatpush1.msra.mxu0 %v409
    %461 = vmatprep.subr.mxu0 0.0
    %462 = vmatpush1.msra.mxu0 %v408
    %463 = vmatprep.subr.mxu0 0.0
    %464 = vmatpush1.msra.mxu0 %v407
    %465 = vmatprep.subr.mxu0 0.0
    %466 = vmatpush1.msra.mxu0 %v406
    %467 = vmatprep.subr.mxu0 0.0
    %468 = vmatpush1.msra.mxu0 %v405
    %469 = vmatprep.subr.mxu0 0.0
    %470 = vmatpush1.msra.mxu0 %v404
    %471 = vmatprep.subr.mxu0 0.0
    %472 = vmatpush1.msra.mxu0 %v403
    %473 = vmatprep.subr.mxu0 0.0
    %474 = vmatpush1.msra.mxu0 %v402
    %475 = vmatprep.subr.mxu0 0.0
    %476 = vmatpush1.msra.mxu0 %v401
    %477 = vmatprep.subr.mxu0 0.0
    %478 = vmatpush1.msra.mxu0 %v400
    %479 = vmatprep.subr.mxu0 0.0
    %480 = vmatpush1.msra.mxu0 %v399
    %481 = vmatprep.subr.mxu0 0.0
    %482 = vmatpush1.msra.mxu0 %v398
    %483 = vmatprep.subr.mxu0 0.0
    %484 = vmatpush1.msra.mxu0 %v397
    %485 = vmatprep.subr.mxu0 0.0
    %486 = vmatpush2.msra.mxu0 %v428
    %487 = vmatprep.subr.mxu0 0.0
    %488 = vmatpush2.msra.mxu0 %v427
    %489 = vmatprep.subr.mxu0 0.0
    %490 = vmatpush2.msra.mxu0 %v426
    %491 = vmatprep.subr.mxu0 0.0
    %492 = vmatpush2.msra.mxu0 %v425
    %493 = vmatprep.subr.mxu0 0.0
    %494 = vmatpush2.msra.mxu0 %v424
    %495 = vmatprep.subr.mxu0 0.0
    %496 = vmatpush2.msra.mxu0 %v423
    %497 = vmatprep.subr.mxu0 0.0
    %498 = vmatpush2.msra.mxu0 %v422
    %499 = vmatprep.subr.mxu0 0.0
    %500 = vmatpush2.msra.mxu0 %v421
    %501 = vmatprep.subr.mxu0 0.0
    %502 = vmatpush2.msra.mxu0 %v420
    %503 = vmatprep.subr.mxu0 0.0
    %504 = vmatpush2.msra.mxu0 %v419
    %505 = vmatprep.subr.mxu0 0.0
    %506 = vmatpush2.msra.mxu0 %v418
    %507 = vmatprep.subr.mxu0 0.0
    %508 = vmatpush2.msra.mxu0 %v417
    %509 = vmatprep.subr.mxu0 0.0
    %510 = vmatpush2.msra.mxu0 %v416
    %511 = vmatprep.subr.mxu0 0.0
    %512 = vmatpush2.msra.mxu0 %v415
    %513 = vmatprep.subr.mxu0 0.0
    %514 = vmatpush2.msra.mxu0 %v414
    %515 = vmatprep.subr.mxu0 0.0
    %516 = vmatpush2.msra.mxu0 %v413
    %517 = vmatprep.mubr.f32.mxu0 %v450
    %518 = vmatmul.mubr.f32.gmra.mxu0 %v449
    %v519 = vpop.f32.mrf.mxu0
    %v520 = vadd.f32 0.0, %v519
    %v521 = vpop.f32.mrf.mxu0
    %522 = vdwg.mxu0
    %v523 = vrsqrt.pop %v520
    %v524 = vmul.f32 %v520, %v523
    %vm525 = vcmp.eq.f32.partialorder %v520, inf
    %v526 = vsel %vm525, %v520, %v524
    %vm527 = vcmp.eq.f32.partialorder %v520, 0.0
    %v528 = vand.u32 %v520, 2147483648
    %v529 = vsel %vm527, %v528, %v526
    %v530 = vld [vmem:[%s4] sm:$0x1]
    %v532 = vlaneseq
    %v533 = vshrl.u32 %v532, 7
    %v534 = vsub.s32 0, %v533
    %v535 = vrot.slane %v530, %v534
    %v537 = vmul.f32 %v529, %v535
    %v538 = vadd.f32 %v537, 1e-08
    %v539 = vrcp.pop %v538
    %v540 = vmul.f32 %v390, %v539
    %541 = vst [vmem:[#allocation10] sm:$0xff] %v540
    // Predicated region
    $region38: #{tpu_custom_call.1} parent=1 // pred_check
      _
    $region39: #{tpu_custom_call.1} parent=1 // pred_check_branch
      %543 = sbr.rel (0) target = $region41
    $region40: #{tpu_custom_call.1} parent=1 // pred_region
      %s545 = ssub.s32 128, 32
      %546 = vsyncadd [#allocation4], %s545
      %s547 = sshll.u32 [#allocation10], 4
      %s548 = int_to_ptr.vmem [resolvable:$true] %s547
      %553 = dma.vmem_to_hbm [thread:$0]  %s548, 32, %s5, [#allocation4], 32, 32, 2
    $region41: #{tpu_custom_call.1} parent=1 // pred_fallthru
      _
    // Predicated region
    $region42: #{tpu_custom_call.1} parent=1 // pred_check
      _
    $region43: #{tpu_custom_call.1} parent=1 // pred_check_branch
      %555 = sbr.rel (0) target = $region45
    $region44: #{tpu_custom_call.1} parent=1 // pred_region
      %556 = dma.done [#allocation4], 128
    $region45: #{tpu_custom_call.1} parent=1 // pred_fallthru
      _
    %557 = vsyncpa [#allocation3], 1
    %558 = vsyncpa [#allocation6], 1
    %559 = vsyncpa [#allocation9], 1
    %560 = vsyncpa [#allocation4], 1

</llo_original>
